<compile_context>
chip_gen: v7x
topology: tpu7x:2x2x1
jax: 0.10.0
libtpu: 0.0.40
codegen_flags: <defaults>
</compile_context>

<pallas_src>
import functools

import jax
import jax.numpy as jnp
from jax.experimental import pallas as pl
from jax.experimental.pallas import tpu as pltpu


def _rmsnorm_kernel(x_ref, scale_ref, o_ref, *, eps, inv_d):
    # x_ref:     (TILE_ROWS, D) tile in VMEM (input dtype)
    # scale_ref: (1, D)         grid-invariant block
    # o_ref:     (TILE_ROWS, D) output tile (input dtype)
    x = x_ref[...].astype(jnp.float32)
    # mean(x^2) over the last dim; 1/D folded as a trace-time constant.
    ms = jnp.sum(x * x, axis=-1, keepdims=True) * inv_d
    inv_rms = jax.lax.rsqrt(ms + eps)
    scale = scale_ref[...].astype(jnp.float32)
    o_ref[...] = ((x * inv_rms) * scale).astype(o_ref.dtype)


def rmsnorm(x, scale, eps=1e-6, tile_rows=None):
    """RMSNorm over the last axis of x, scaled by `scale` (shape (d_model,))."""
    orig_shape = x.shape
    d_model = orig_shape[-1]
    rows = 1
    for s in orig_shape[:-1]:
        rows *= s

    x2d = x.reshape(rows, d_model)
    scale2d = scale.reshape(1, d_model).astype(x.dtype)

    itemsize = jnp.dtype(x.dtype).itemsize
    # Sublane packing: 8 rows/vreg for 32-bit, 16 for bf16, 32 for 8-bit.
    pack = max(8, 32 // itemsize)

    if tile_rows is None:
        # Target ~4 MiB per input tile: double-buffered in + out => ~16 MiB
        # of pipeline VMEM, safe on v5e/v6e/v7x alike.
        target_tile_bytes = 4 * 1024 * 1024
        tile_rows = target_tile_bytes // max(d_model * itemsize, 1)
        tile_rows = min(max(tile_rows, pack), 1024)

    if tile_rows >= rows:
        # One block covering the whole array (full-extent blocks are always
        # a legal block shape, regardless of (8,128) divisibility).
        tile_rows = rows
    else:
        tile_rows = max(pack, (tile_rows // pack) * pack)

    grid = (pl.cdiv(rows, tile_rows),)

    # Scoped-VMEM limit: double-buffered x + out tiles, the scale block and
    # headroom.  Floor at 32 MiB (raises v5e's 16 MiB scoped default), cap at
    # 48 MiB so v7x (64 MiB physical VMEM) keeps headroom.
    tile_bytes = tile_rows * d_model * itemsize
    needed = 4 * tile_bytes + 4 * d_model * itemsize + (2 << 20)
    vmem_limit = int(min(max(needed, 32 << 20), 48 << 20))

    kernel = functools.partial(
        _rmsnorm_kernel, eps=float(eps), inv_d=1.0 / float(d_model)
    )

    out2d = pl.pallas_call(
        kernel,
        out_shape=jax.ShapeDtypeStruct((rows, d_model), x2d.dtype),
        grid_spec=pltpu.PrefetchScalarGridSpec(
            num_scalar_prefetch=0,
            grid=grid,
            in_specs=[
                pl.BlockSpec((tile_rows, d_model), lambda i: (i, 0)),
                pl.BlockSpec((1, d_model), lambda i: (0, 0)),
            ],
            out_specs=pl.BlockSpec((tile_rows, d_model), lambda i: (i, 0)),
        ),
        compiler_params=pltpu.CompilerParams(
            dimension_semantics=("parallel",),
            vmem_limit_bytes=vmem_limit,
        ),
    )(x2d, scale2d)

    return out2d.reshape(orig_shape)


def rmsnorm_ref(x, scale, eps=1e-6):
    rms = jnp.sqrt(jnp.mean(x.astype(jnp.float32) ** 2, axis=-1, keepdims=True) + eps)
    return (scale * (x.astype(jnp.float32) / rms)).astype(x.dtype)


if __name__ == "__main__":
    key = jax.random.PRNGKey(0)
    # Matches the PyTorch module spec: d_model = 512 (lane-dense, 512 % 128 == 0).
    batch, seq, d_model = 2, 8, 512

    x = jax.random.normal(key, (batch, seq, d_model), dtype=jnp.float32)
    # Deterministic parameter init, matching nn.Parameter(torch.ones(d_model)).
    scale = jnp.ones((d_model,), dtype=jnp.float32)

    out = rmsnorm(x, scale)
    out = jax.block_until_ready(out)

    ref = rmsnorm_ref(x, scale)
    assert out.shape == x.shape
    assert jnp.allclose(out, ref, atol=1e-5, rtol=1e-5)

    # Also exercise a row count that is NOT a multiple of the tile size
    # (partial last block, masked stores, no host-side padding).
    x_odd = jax.random.normal(key, (3, 7, d_model), dtype=jnp.float32)
    out_odd = jax.block_until_ready(rmsnorm(x_odd, scale, tile_rows=16))
    assert jnp.allclose(out_odd, rmsnorm_ref(x_odd, scale), atol=1e-5, rtol=1e-5)

    print("KERNEL_OK")
</pallas_src>

<mosaic_0001>
module attributes {stable_mosaic.version = 11 : i64} {
  func.func @_rmsnorm_kernel(%arg0: i32, %arg1: memref<16x512xf32, #tpu.memory_space<vmem>>, %arg2: memref<1x512xf32, #tpu.memory_space<vmem>>, %arg3: memref<16x512xf32, #tpu.memory_space<vmem>>) attributes {dimension_semantics = [#tpu.dimension_semantics<parallel>], iteration_bounds = array<i64: 1>, scalar_prefetch = 0 : i64, scratch_operands = 0 : i64, tpu.core_type = #tpu.core_type<tc>, window_params = [{transform_indices = @transform_0, window_bounds = array<i64: 16, 512>}, {pipeline_mode = #tpu.pipeline_mode<synchronous>, transform_indices = @transform_1, window_bounds = array<i64: 1, 512>}, {transform_indices = @transform_2, window_bounds = array<i64: 16, 512>}]} {
    %c0 = arith.constant 0 : index
    %c0_0 = arith.constant 0 : index
    %0 = vector.load %arg1[%c0, %c0_0] : memref<16x512xf32, #tpu.memory_space<vmem>>, vector<16x512xf32>
    %1 = arith.mulf %0, %0 : vector<16x512xf32>
    %cst = arith.constant dense<0.000000e+00> : vector<16xf32>
    %2 = vector.multi_reduction <add>, %1, %cst [1] : vector<16x512xf32> to vector<16xf32>
    %3 = vector.shape_cast %2 : vector<16xf32> to vector<16x1xf32>
    %cst_1 = arith.constant 0.001953125 : f32
    %4 = vector.broadcast %cst_1 : f32 to vector<16x1xf32>
    %5 = arith.mulf %3, %4 : vector<16x1xf32>
    %cst_2 = arith.constant 9.99999997E-7 : f32
    %6 = vector.broadcast %cst_2 : f32 to vector<16x1xf32>
    %7 = arith.addf %5, %6 : vector<16x1xf32>
    %8 = math.rsqrt %7 : vector<16x1xf32>
    %c0_3 = arith.constant 0 : index
    %c0_4 = arith.constant 0 : index
    %9 = vector.load %arg2[%c0_3, %c0_4] : memref<1x512xf32, #tpu.memory_space<vmem>>, vector<1x512xf32>
    %10 = vector.broadcast %8 : vector<16x1xf32> to vector<16x512xf32>
    %11 = arith.mulf %0, %10 : vector<16x512xf32>
    %12 = vector.broadcast %9 : vector<1x512xf32> to vector<16x512xf32>
    %13 = arith.mulf %11, %12 : vector<16x512xf32>
    %c0_5 = arith.constant 0 : index
    %c0_6 = arith.constant 0 : index
    %14 = vector.load %arg3[%c0_5, %c0_6] : memref<16x512xf32, #tpu.memory_space<vmem>>, vector<16x512xf32>
    tpu.vector_store %arg3[%c0_5, %c0_6], %13 {strides = array<i32>} : memref<16x512xf32, #tpu.memory_space<vmem>>, vector<16x512xf32>,
    return
  }
  func.func @transform_0(%arg0: i32) -> (i32, i32) {
    %c0_i32 = arith.constant 0 : i32
    %c0_i32_0 = arith.constant 0 : i32
    return %arg0, %c0_i32 : i32, i32
  }
  func.func @transform_1(%arg0: i32) -> (i32, i32) {
    %c0_i32 = arith.constant 0 : i32
    %c0_i32_0 = arith.constant 0 : i32
    %c0_i32_1 = arith.constant 0 : i32
    return %c0_i32, %c0_i32_0 : i32, i32
  }
  func.func @transform_2(%arg0: i32) -> (i32, i32) {
    %c0_i32 = arith.constant 0 : i32
    %c0_i32_0 = arith.constant 0 : i32
    return %arg0, %c0_i32 : i32, i32
  }
}

</mosaic_0001>

<llo_original>
// kernel: tpu_custom_call.1
$region0: #{tpu_custom_call.1}
  #allocation0 [shape = 'u32[]', space=smem, size = 0x4, offset = 0x4, fixed_abs, tag = 'smem constant byte address 0x4 - core index']
  #allocation1 [shape = 'u32[144,128]{1,0:T(1,128)}', space=vmem, size = 0x12000, scoped, tag = 'internal scratch']
  %s0 = inlined_call_operand.hbm [shape: f32[16,512], index: 0, kind: input, shape index: {}]
  %s1 = inlined_call_operand.hbm [shape: f32[1,512], index: 1, kind: input, shape index: {}]
  %s2 = inlined_call_operand.hbm [shape: f32[16,512], index: 2, kind: output, shape index: {}]
  %s3 = sld [smem:[#allocation0]]
  $region26: #{tpu_custom_call.1} parent=0
    _
  %s5 = ssub.s32 1, %s3
  %s6 = scalar_select 0, %s5, %s3
  $region1: #{tpu_custom_call.1} parent=0
    #allocation2 [shape = 'u8[32768]{0}', space=vmem, size = 0x8000, scoped, tag = 'input window, operand 0, single buffered']
    #allocation3 [shape = 's32[1]{0}', space=sflag, size = 0x4, scoped, tag = 'scoped memory for tpu_custom_call.1']
    #allocation4 [shape = 's32[1]{0}', space=sflag, size = 0x4, scoped, tag = 'scoped memory for tpu_custom_call.1']
    #allocation5 [shape = 'u8[2048]{0}', space=vmem, size = 0x800, scoped, tag = 'input window, operand 1, single buffered']
    #allocation6 [shape = 's32[1]{0}', space=sflag, size = 0x4, scoped, tag = 'scoped memory for tpu_custom_call.1']
    #allocation7 [shape = 'u8[32768]{0}', space=vmem, size = 0x8000, scoped, tag = 'output window, operand 0, single buffered']
    %7 = vsyncpa [#allocation3], 0
    %8 = vsyncpa [#allocation6], 0
    %9 = vsyncpa [#allocation4], 0
    // Predicated region
    $region2: #{tpu_custom_call.1} parent=1 // pred_check
      _
    $region3: #{tpu_custom_call.1} parent=1 // pred_check_branch
      %11 = sbr.rel (0) target = $region5
    $region4: #{tpu_custom_call.1} parent=1 // pred_region
      %s13 = ssub.s32 1024, 1024
      %14 = vsyncadd [#allocation3], %s13
      %s15 = sshll.u32 [#allocation2], 4
      %s16 = int_to_ptr.vmem [resolvable:$true] %s15
      %21 = dma.hbm_to_vmem [thread:$0]  %s0, 1024, %s16, [#allocation3], 512, 512, 32
    $region5: #{tpu_custom_call.1} parent=1 // pred_fallthru
      _
    // Predicated region
    $region6: #{tpu_custom_call.1} parent=1 // pred_check
      _
    $region7: #{tpu_custom_call.1} parent=1 // pred_check_branch
      %23 = sbr.rel (0) target = $region9
    $region8: #{tpu_custom_call.1} parent=1 // pred_region
      %s25 = ssub.s32 64, 64
      %26 = vsyncadd [#allocation6], %s25
      %s28 = sshll.u32 [#allocation5], 4
      %s29 = int_to_ptr.vmem [resolvable:$true] %s28
      %31 = dma.hbm_to_vmem [thread:$0]  %s1, 64, %s29, [#allocation6]
    $region9: #{tpu_custom_call.1} parent=1 // pred_fallthru
      _
    // Predicated region
    $region10: #{tpu_custom_call.1} parent=1 // pred_check
      _
    $region11: #{tpu_custom_call.1} parent=1 // pred_check_branch
      %33 = sbr.rel (0) target = $region13
    $region12: #{tpu_custom_call.1} parent=1 // pred_region
      %34 = dma.done [#allocation3], 1024
    $region13: #{tpu_custom_call.1} parent=1 // pred_fallthru
      _
    // Predicated region
    $region14: #{tpu_custom_call.1} parent=1 // pred_check
      _
    $region15: #{tpu_custom_call.1} parent=1 // pred_check_branch
      %36 = sbr.rel (0) target = $region17
    $region16: #{tpu_custom_call.1} parent=1 // pred_region
      %37 = dma.done [#allocation6], 64
    $region17: #{tpu_custom_call.1} parent=1 // pred_fallthru
      _
    %v38 = vld [vmem:[#allocation2] sm:$0xff]
    %v39 = vld [vmem:[#allocation2 + $0x8] sm:$0xff]
    %v40 = vld [vmem:[#allocation2 + $0x10] sm:$0xff]
    %v41 = vld [vmem:[#allocation2 + $0x18] sm:$0xff]
    %v42 = vld [vmem:[#allocation2 + $0x20] sm:$0xff]
    %v43 = vld [vmem:[#allocation2 + $0x28] sm:$0xff]
    %v44 = vld [vmem:[#allocation2 + $0x30] sm:$0xff]
    %v45 = vld [vmem:[#allocation2 + $0x38] sm:$0xff]
    %v46 = vmul.f32 %v38, %v38
    %v47 = vmul.f32 %v39, %v39
    %v48 = vmul.f32 %v40, %v40
    %v49 = vmul.f32 %v41, %v41
    %v50 = vmul.f32 %v42, %v42
    %v51 = vmul.f32 %v43, %v43
    %v52 = vmul.f32 %v44, %v44
    %v53 = vmul.f32 %v45, %v45
    %v54 = vadd.f32 %v46, %v47
    %v55 = vadd.f32 %v54, %v48
    %v56 = vadd.f32 %v55, %v49
    %57 = vadd.xlane.f32.xlu0 %v56
    %v58 = vpop.xlane.xlu0 %57
    %v59 = vadd.f32 %v50, %v51
    %v60 = vadd.f32 %v59, %v52
    %v61 = vadd.f32 %v60, %v53
    %62 = vadd.xlane.f32.xlu0 %v61
    %v63 = vpop.xlane.xlu0 %62
    %v64 = vmul.f32 %v58, 0.001953125
    %v65 = vmul.f32 %v63, 0.001953125
    %v66 = vadd.f32 %v64, 1e-06
    %v67 = vadd.f32 %v65, 1e-06
    %v68 = vrsqrt.pop %v66
    %v69 = vrsqrt.pop %v67
    %v70 = vld [vmem:[#allocation5] sm:$0xf]
    %v71 = vmul.f32 %v38, %v68
    %v72 = vmul.f32 %v39, %v68
    %v73 = vmul.f32 %v40, %v68
    %v74 = vmul.f32 %v41, %v68
    %v75 = vmul.f32 %v42, %v69
    %v76 = vmul.f32 %v43, %v69
    %v77 = vmul.f32 %v44, %v69
    %v78 = vmul.f32 %v45, %v69
    %v80 = vlaneseq
    %v81 = vshrl.u32 %v80, 7
    %v82 = vsub.s32 0, %v81
    %v83 = vrot.slane %v70, %v82
    %v84 = vlaneseq
    %v85 = vshrl.u32 %v84, 7
    %v86 = vsub.s32 1, %v85
    %v87 = vrot.slane %v70, %v86
    %v88 = vlaneseq
    %v89 = vshrl.u32 %v88, 7
    %v90 = vsub.s32 2, %v89
    %v91 = vrot.slane %v70, %v90
    %v92 = vlaneseq
    %v93 = vshrl.u32 %v92, 7
    %v94 = vsub.s32 3, %v93
    %v95 = vrot.slane %v70, %v94
    %v100 = vmul.f32 %v71, %v83
    %v101 = vmul.f32 %v72, %v87
    %v102 = vmul.f32 %v73, %v91
    %v103 = vmul.f32 %v74, %v95
    %v104 = vmul.f32 %v75, %v83
    %v105 = vmul.f32 %v76, %v87
    %v106 = vmul.f32 %v77, %v91
    %v107 = vmul.f32 %v78, %v95
    %108 = vst [vmem:[#allocation7] sm:$0xff] %v100
    %109 = vst [vmem:[#allocation7 + $0x8] sm:$0xff] %v101
    %110 = vst [vmem:[#allocation7 + $0x10] sm:$0xff] %v102
    %111 = vst [vmem:[#allocation7 + $0x18] sm:$0xff] %v103
    %112 = vst [vmem:[#allocation7 + $0x20] sm:$0xff] %v104
    %113 = vst [vmem:[#allocation7 + $0x28] sm:$0xff] %v105
    %114 = vst [vmem:[#allocation7 + $0x30] sm:$0xff] %v106
    %115 = vst [vmem:[#allocation7 + $0x38] sm:$0xff] %v107
    // Predicated region
    $region18: #{tpu_custom_call.1} parent=1 // pred_check
      _
    $region19: #{tpu_custom_call.1} parent=1 // pred_check_branch
      %117 = sbr.rel (0) target = $region21
    $region20: #{tpu_custom_call.1} parent=1 // pred_region
      %s119 = ssub.s32 1024, 1024
      %120 = vsyncadd [#allocation4], %s119
      %s121 = sshll.u32 [#allocation7], 4
      %s122 = int_to_ptr.vmem [resolvable:$true] %s121
      %127 = dma.vmem_to_hbm [thread:$0]  %s122, 1024, %s2, [#allocation4], 512, 512, 32
    $region21: #{tpu_custom_call.1} parent=1 // pred_fallthru
      _
    // Predicated region
    $region22: #{tpu_custom_call.1} parent=1 // pred_check
      _
    $region23: #{tpu_custom_call.1} parent=1 // pred_check_branch
      %129 = sbr.rel (0) target = $region25
    $region24: #{tpu_custom_call.1} parent=1 // pred_region
      %130 = dma.done [#allocation4], 1024
    $region25: #{tpu_custom_call.1} parent=1 // pred_fallthru
      _
    %131 = vsyncpa [#allocation3], 1
    %132 = vsyncpa [#allocation6], 1
    %133 = vsyncpa [#allocation4], 1

</llo_original>
